<compile_context>
chip_gen: v6e
topology: v6e:2x2x1
jax: 0.10.0
libtpu: 0.0.40
codegen_flags: <defaults>
</compile_context>

<pallas_src>
import jax
import jax.numpy as jnp
from jax.experimental import pallas as pl
from jax.experimental.pallas import tpu as pltpu

LANES = 128           # lane-dense width for every feature/hidden/output dim
P_ROWS = 392          # 3 * 128 weight slabs + bias rows 384..386, padded to 8
OUT_ROWS = 8          # sublane-dense output slab (>= B, multiple of 8)


def classifier_kernel(a_ref, x_ref, m_ref, p_ref, out_ref):
    # a_ref: (BN, BN) block-diag normalized adjacency (f32)
    # x_ref: (BN, 128) stacked node features, lanes 20.. are 0
    # m_ref: (8, BN)   per-graph mean matrix (row b = 1/count_b over graph b's rows)
    # p_ref: (392, 128) resident parameter slab
    # out_ref: (8, 128) per-graph logits slab (cols 5.. are padding)
    a = a_ref[...]
    x = x_ref[...]
    m = m_ref[...]

    # Static slices into the resident parameter slab (no extra DMAs).
    w1 = p_ref[0:128, :]              # GraphConv1 weight, rows 0..19 / cols 0..15 live
    w2 = p_ref[128:256, :]            # GraphConv2 weight, rows 0..15 / cols 0..7 live
    wc = p_ref[256:384, :]            # classify weight,  rows 0..7  / cols 0..4 live
    b1 = p_ref[384:385, :]            # [1, 128] biases (zero in padding lanes)
    b2 = p_ref[385:386, :]
    bc = p_ref[386:387, :]

    # GraphConv(20, 16): relu(A_blk @ (X @ W1) + b1); padding lanes stay zero.
    h = jnp.dot(x, w1, preferred_element_type=jnp.float32)               # [BN, 128]
    h = jnp.maximum(jnp.dot(a, h, preferred_element_type=jnp.float32) + b1, 0.0)

    # GraphConv(16, 8): relu(A_blk @ (H @ W2) + b2)
    h = jnp.dot(h, w2, preferred_element_type=jnp.float32)               # [BN, 128]
    h = jnp.maximum(jnp.dot(a, h, preferred_element_type=jnp.float32) + b2, 0.0)

    # Per-graph node mean FIRST (one MXU push; correct per-graph denominator
    # even with padded node rows), then the small classify matmul on [8, 128].
    hg = jnp.dot(m, h, preferred_element_type=jnp.float32)               # [8, 128]
    out_ref[...] = jnp.dot(hg, wc, preferred_element_type=jnp.float32) + bc


def pack_params(w1, b1, w2, b2, wc, bc):
    """Pack all weights/biases into one lane-aligned f32 slab [P_ROWS, 128]."""
    p = jnp.zeros((P_ROWS, LANES), jnp.float32)
    p = p.at[0:w1.shape[0], 0:w1.shape[1]].set(w1)            # rows   0..19
    p = p.at[128:128 + w2.shape[0], 0:w2.shape[1]].set(w2)    # rows 128..143
    p = p.at[256:256 + wc.shape[0], 0:wc.shape[1]].set(wc)    # rows 256..263
    p = p.at[384, 0:b1.shape[-1]].set(b1.reshape(-1))
    p = p.at[385, 0:b2.shape[-1]].set(b2.reshape(-1))
    p = p.at[386, 0:bc.shape[-1]].set(bc.reshape(-1))
    return p


def classifier_forward(a_batch, x_batch, w1, b1, w2, b2, wc, bc, node_counts=None):
    """a_batch: [B, N, N] normalized adjacency; x_batch: [B, N, 20] features.
    node_counts: optional [B] real-node counts (defaults to N for every graph).
    Returns [B, 5] logits (one row per graph, identical to the module's
    per-graph forward)."""
    B, N, f_in = x_batch.shape
    BN = B * N
    assert B <= OUT_ROWS, "bump OUT_ROWS (must stay a multiple of 8)"
    if node_counts is None:
        node_counts = jnp.full((B,), N, jnp.float32)

    # Stacked, lane-dense node features: pad feature dim 20 -> 128 on the host.
    x_stack = jnp.zeros((BN, LANES), jnp.float32)
    x_stack = x_stack.at[:, :f_in].set(
        x_batch.astype(jnp.float32).reshape(BN, f_in))

    # Block-diagonal adjacency: one fused graph, no cross-graph edges.
    a_blk = jnp.zeros((BN, BN), jnp.float32)
    for b in range(B):
        a_blk = a_blk.at[b * N:(b + 1) * N, b * N:(b + 1) * N].set(
            a_batch[b].astype(jnp.float32))

    # Per-graph mean matrix: row b averages graph b's node rows with its own
    # node count (correct even if graphs are padded to a common N).
    mean_mat = jnp.zeros((OUT_ROWS, BN), jnp.float32)
    for b in range(B):
        mean_mat = mean_mat.at[b, b * N:(b + 1) * N].set(1.0 / node_counts[b])

    params = pack_params(w1, b1, w2, b2, wc, bc)

    out = pl.pallas_call(
        classifier_kernel,
        out_shape=jax.ShapeDtypeStruct((OUT_ROWS, LANES), jnp.float32),
        grid=(1,),  # whole batch fused into one step (review: collapse the grid)
        in_specs=[
            pl.BlockSpec((BN, BN), lambda g: (0, 0)),          # block-diag A
            pl.BlockSpec((BN, LANES), lambda g: (0, 0)),       # stacked X
            pl.BlockSpec((OUT_ROWS, BN), lambda g: (0, 0)),    # mean matrix
            pl.BlockSpec((P_ROWS, LANES), lambda g: (0, 0)),   # resident params
        ],
        out_specs=pl.BlockSpec((OUT_ROWS, LANES), lambda g: (0, 0)),
        compiler_params=pltpu.CompilerParams(
            dimension_semantics=("arbitrary",),
        ),
    )(a_blk, x_stack, mean_mat, params)

    return out[:B, :5]                                          # [B, 5]


def build_normalized_adjacency(key, n):
    """Random undirected graph; DGL-style symmetric normalization D^-1/2 A D^-1/2."""
    bits = jax.random.bernoulli(key, p=0.4, shape=(n, n)).astype(jnp.float32)
    upper = jnp.triu(bits, k=1)
    adj = upper + upper.T                          # symmetric, no self-loops
    deg = jnp.sum(adj, axis=1)
    deg = jnp.clip(deg, 1.0, None)                 # DGL clamps zero-degree nodes
    d_inv_sqrt = 1.0 / jnp.sqrt(deg)
    return adj * d_inv_sqrt[:, None] * d_inv_sqrt[None, :]


def glorot(key, shape):
    fan_in, fan_out = shape
    limit = jnp.sqrt(6.0 / (fan_in + fan_out))
    return jax.random.uniform(key, shape, jnp.float32, -limit, limit)


if __name__ == "__main__":
    key = jax.random.PRNGKey(0)
    k_adj, k_x, k_w1, k_w2, k_wc = jax.random.split(key, 5)

    B = 4            # number of graphs in the batch (all fused into one step)
    N = 8            # nodes per graph
    IN_DIM = 20      # g.ndata['image'] feature width (GraphConv(20, 16))

    adj_keys = jax.random.split(k_adj, B)
    a_batch = jnp.stack([build_normalized_adjacency(k, N) for k in adj_keys])
    x_batch = jax.random.normal(k_x, (B, N, IN_DIM), jnp.float32)

    # Deterministic synthetic parameters (shapes from the module's __init__).
    w1 = glorot(k_w1, (20, 16)); b1 = jnp.zeros((1, 16), jnp.float32)
    w2 = glorot(k_w2, (16, 8));  b2 = jnp.zeros((1, 8), jnp.float32)
    wc = glorot(k_wc, (8, 5));   bc = jnp.zeros((1, 5), jnp.float32)

    out = classifier_forward(a_batch, x_batch, w1, b1, w2, b2, wc, bc)
    jax.block_until_ready(out)

    # Pure-JAX reference (per-graph, exactly the module's forward).
    def ref_one(a, x):
        h = jnp.maximum(a @ (x @ w1) + b1, 0.0)
        h = jnp.maximum(a @ (h @ w2) + b2, 0.0)
        return jnp.mean(h, axis=0, keepdims=True) @ wc + bc
    ref = jnp.concatenate([ref_one(a_batch[i], x_batch[i]) for i in range(B)], axis=0)

    assert out.shape == (B, 5)
    assert jnp.allclose(out, ref, atol=1e-5, rtol=1e-5)

    print("KERNEL_OK")
</pallas_src>

<mosaic_0001>
module attributes {stable_mosaic.version = 11 : i64} {
  func.func @classifier_kernel(%arg0: i32, %arg1: memref<32x32xf32, #tpu.memory_space<vmem>>, %arg2: memref<32x128xf32, #tpu.memory_space<vmem>>, %arg3: memref<8x32xf32, #tpu.memory_space<vmem>>, %arg4: memref<392x128xf32, #tpu.memory_space<vmem>>, %arg5: memref<8x128xf32, #tpu.memory_space<vmem>>) attributes {dimension_semantics = [#tpu.dimension_semantics<arbitrary>], iteration_bounds = array<i64: 1>, scalar_prefetch = 0 : i64, scratch_operands = 0 : i64, tpu.core_type = #tpu.core_type<tc>, window_params = [{pipeline_mode = #tpu.pipeline_mode<synchronous>, transform_indices = @transform_0, window_bounds = array<i64: 32, 32>}, {pipeline_mode = #tpu.pipeline_mode<synchronous>, transform_indices = @transform_1, window_bounds = array<i64: 32, 128>}, {pipeline_mode = #tpu.pipeline_mode<synchronous>, transform_indices = @transform_2, window_bounds = array<i64: 8, 32>}, {pipeline_mode = #tpu.pipeline_mode<synchronous>, transform_indices = @transform_3, window_bounds = array<i64: 392, 128>}, {pipeline_mode = #tpu.pipeline_mode<synchronous>, transform_indices = @transform_4, window_bounds = array<i64: 8, 128>}]} {
    %c0 = arith.constant 0 : index
    %c0_0 = arith.constant 0 : index
    %0 = vector.load %arg1[%c0, %c0_0] : memref<32x32xf32, #tpu.memory_space<vmem>>, vector<32x32xf32>
    %c0_1 = arith.constant 0 : index
    %c0_2 = arith.constant 0 : index
    %1 = vector.load %arg2[%c0_1, %c0_2] : memref<32x128xf32, #tpu.memory_space<vmem>>, vector<32x128xf32>
    %c0_3 = arith.constant 0 : index
    %c0_4 = arith.constant 0 : index
    %2 = vector.load %arg3[%c0_3, %c0_4] : memref<8x32xf32, #tpu.memory_space<vmem>>, vector<8x32xf32>
    %c0_5 = arith.constant 0 : index
    %c0_6 = arith.constant 0 : index
    %3 = vector.load %arg4[%c0_5, %c0_6] : memref<392x128xf32, #tpu.memory_space<vmem>>, vector<128x128xf32>
    %c128 = arith.constant 128 : index
    %c0_7 = arith.constant 0 : index
    %4 = vector.load %arg4[%c128, %c0_7] : memref<392x128xf32, #tpu.memory_space<vmem>>, vector<128x128xf32>
    %c256 = arith.constant 256 : index
    %c0_8 = arith.constant 0 : index
    %5 = vector.load %arg4[%c256, %c0_8] : memref<392x128xf32, #tpu.memory_space<vmem>>, vector<128x128xf32>
    %c384 = arith.constant 384 : index
    %c0_9 = arith.constant 0 : index
    %6 = vector.load %arg4[%c384, %c0_9] : memref<392x128xf32, #tpu.memory_space<vmem>>, vector<1x128xf32>
    %c385 = arith.constant 385 : index
    %c0_10 = arith.constant 0 : index
    %7 = vector.load %arg4[%c385, %c0_10] : memref<392x128xf32, #tpu.memory_space<vmem>>, vector<1x128xf32>
    %c386 = arith.constant 386 : index
    %c0_11 = arith.constant 0 : index
    %8 = vector.load %arg4[%c386, %c0_11] : memref<392x128xf32, #tpu.memory_space<vmem>>, vector<1x128xf32>
    %cst = arith.constant dense<0.000000e+00> : vector<32x128xf32>
    %9 = tpu.matmul %1, %3, %cst {dimension_numbers = #tpu.dot_dimension_numbers<[1], [0], [0], [1], [0, 0, 1, 1], [], []>} : vector<32x128xf32>, vector<128x128xf32>, vector<32x128xf32> -> vector<32x128xf32>
    %cst_12 = arith.constant dense<0.000000e+00> : vector<32x128xf32>
    %10 = tpu.matmul %0, %9, %cst_12 {dimension_numbers = #tpu.dot_dimension_numbers<[1], [0], [0], [1], [0, 0, 1, 1], [], []>} : vector<32x32xf32>, vector<32x128xf32>, vector<32x128xf32> -> vector<32x128xf32>
    %11 = vector.broadcast %6 : vector<1x128xf32> to vector<32x128xf32>
    %12 = arith.addf %10, %11 : vector<32x128xf32>
    %cst_13 = arith.constant 0.000000e+00 : f32
    %13 = vector.broadcast %cst_13 : f32 to vector<32x128xf32>
    %14 = arith.maximumf %12, %13 : vector<32x128xf32>
    %cst_14 = arith.constant dense<0.000000e+00> : vector<32x128xf32>
    %15 = tpu.matmul %14, %4, %cst_14 {dimension_numbers = #tpu.dot_dimension_numbers<[1], [0], [0], [1], [0, 0, 1, 1], [], []>} : vector<32x128xf32>, vector<128x128xf32>, vector<32x128xf32> -> vector<32x128xf32>
    %cst_15 = arith.constant dense<0.000000e+00> : vector<32x128xf32>
    %16 = tpu.matmul %0, %15, %cst_15 {dimension_numbers = #tpu.dot_dimension_numbers<[1], [0], [0], [1], [0, 0, 1, 1], [], []>} : vector<32x32xf32>, vector<32x128xf32>, vector<32x128xf32> -> vector<32x128xf32>
    %17 = vector.broadcast %7 : vector<1x128xf32> to vector<32x128xf32>
    %18 = arith.addf %16, %17 : vector<32x128xf32>
    %cst_16 = arith.constant 0.000000e+00 : f32
    %19 = vector.broadcast %cst_16 : f32 to vector<32x128xf32>
    %20 = arith.maximumf %18, %19 : vector<32x128xf32>
    %cst_17 = arith.constant dense<0.000000e+00> : vector<8x128xf32>
    %21 = tpu.matmul %2, %20, %cst_17 {dimension_numbers = #tpu.dot_dimension_numbers<[1], [0], [0], [1], [0, 0, 1, 1], [], []>} : vector<8x32xf32>, vector<32x128xf32>, vector<8x128xf32> -> vector<8x128xf32>
    %cst_18 = arith.constant dense<0.000000e+00> : vector<8x128xf32>
    %22 = tpu.matmul %21, %5, %cst_18 {dimension_numbers = #tpu.dot_dimension_numbers<[1], [0], [0], [1], [0, 0, 1, 1], [], []>} : vector<8x128xf32>, vector<128x128xf32>, vector<8x128xf32> -> vector<8x128xf32>
    %23 = vector.broadcast %8 : vector<1x128xf32> to vector<8x128xf32>
    %24 = arith.addf %22, %23 : vector<8x128xf32>
    %c0_19 = arith.constant 0 : index
    %c0_20 = arith.constant 0 : index
    %25 = vector.load %arg5[%c0_19, %c0_20] : memref<8x128xf32, #tpu.memory_space<vmem>>, vector<8x128xf32>
    tpu.vector_store %arg5[%c0_19, %c0_20], %24 {strides = array<i32>} : memref<8x128xf32, #tpu.memory_space<vmem>>, vector<8x128xf32>,
    return
  }
  func.func @transform_0(%arg0: i32) -> (i32, i32) {
    %c0_i32 = arith.constant 0 : i32
    %c0_i32_0 = arith.constant 0 : i32
    %c0_i32_1 = arith.constant 0 : i32
    return %c0_i32, %c0_i32_0 : i32, i32
  }
  func.func @transform_1(%arg0: i32) -> (i32, i32) {
    %c0_i32 = arith.constant 0 : i32
    %c0_i32_0 = arith.constant 0 : i32
    %c0_i32_1 = arith.constant 0 : i32
    return %c0_i32, %c0_i32_0 : i32, i32
  }
  func.func @transform_2(%arg0: i32) -> (i32, i32) {
    %c0_i32 = arith.constant 0 : i32
    %c0_i32_0 = arith.constant 0 : i32
    %c0_i32_1 = arith.constant 0 : i32
    return %c0_i32, %c0_i32_0 : i32, i32
  }
  func.func @transform_3(%arg0: i32) -> (i32, i32) {
    %c0_i32 = arith.constant 0 : i32
    %c0_i32_0 = arith.constant 0 : i32
    %c0_i32_1 = arith.constant 0 : i32
    return %c0_i32, %c0_i32_0 : i32, i32
  }
  func.func @transform_4(%arg0: i32) -> (i32, i32) {
    %c0_i32 = arith.constant 0 : i32
    %c0_i32_0 = arith.constant 0 : i32
    %c0_i32_1 = arith.constant 0 : i32
    return %c0_i32, %c0_i32_0 : i32, i32
  }
}

</mosaic_0001>

<llo_original>
// kernel: tpu_custom_call.1
$region0: #{tpu_custom_call.1}
  #allocation0 [shape = 'u32[]', space=smem, size = 0x4, offset = 0x4, fixed_abs, tag = 'smem constant byte address 0x4 - core index']
  #allocation1 [shape = 'u32[144,128]{1,0:T(1,128)}', space=vmem, size = 0x12000, scoped, tag = 'internal scratch']
  %s0 = inlined_call_operand.hbm [shape: f32[32,32], index: 0, kind: input, shape index: {}]
  %s1 = inlined_call_operand.hbm [shape: f32[32,128], index: 1, kind: input, shape index: {}]
  %s2 = inlined_call_operand.hbm [shape: f32[8,32], index: 2, kind: input, shape index: {}]
  %s3 = inlined_call_operand.hbm [shape: f32[392,128], index: 3, kind: input, shape index: {}]
  %s4 = inlined_call_operand.hbm [shape: f32[8,128], index: 4, kind: output, shape index: {}]
  %s5 = sld [smem:[#allocation0]]
  $region42: #{tpu_custom_call.1} parent=0
    _
  %s7 = ssub.s32 1, %s5
  %s8 = scalar_select 0, %s7, %s5
  $region1: #{tpu_custom_call.1} parent=0
    #allocation2 [shape = 'u8[16384]{0}', space=vmem, size = 0x4000, scoped, tag = 'input window, operand 0, single buffered']
    #allocation3 [shape = 's32[1]{0}', space=sflag, size = 0x4, scoped, tag = 'scoped memory for tpu_custom_call.1']
    #allocation4 [shape = 's32[1]{0}', space=sflag, size = 0x4, scoped, tag = 'scoped memory for tpu_custom_call.1']
    #allocation5 [shape = 'u8[16384]{0}', space=vmem, size = 0x4000, scoped, tag = 'input window, operand 1, single buffered']
    #allocation6 [shape = 's32[1]{0}', space=sflag, size = 0x4, scoped, tag = 'scoped memory for tpu_custom_call.1']
    #allocation7 [shape = 'u8[4096]{0}', space=vmem, size = 0x1000, scoped, tag = 'input window, operand 2, single buffered']
    #allocation8 [shape = 'u8[200704]{0}', space=vmem, size = 0x31000, scoped, tag = 'input window, operand 3, single buffered']
    #allocation9 [shape = 's32[1]{0}', space=sflag, size = 0x4, scoped, tag = 'scoped memory for tpu_custom_call.1']
    #allocation10 [shape = 'u8[4096]{0}', space=vmem, size = 0x1000, scoped, tag = 'output window, operand 0, single buffered']
    %9 = vsyncpa [#allocation3], 0
    %10 = vsyncpa [#allocation6], 0
    %11 = vsyncpa [#allocation9], 0
    %12 = vsyncpa [#allocation4], 0
    // Predicated region
    $region2: #{tpu_custom_call.1} parent=1 // pred_check
      _
    $region3: #{tpu_custom_call.1} parent=1 // pred_check_branch
      %14 = sbr.rel (0) target = $region5
    $region4: #{tpu_custom_call.1} parent=1 // pred_region
      %s16 = ssub.s32 512, 512
      %17 = vsyncadd [#allocation3], %s16
      %s18 = sshll.u32 [#allocation2], 4
      %s19 = int_to_ptr.vmem [resolvable:$true] %s18
      %24 = dma.hbm_to_vmem [thread:$0]  %s0, 512, %s19, [#allocation3], 128, 128, 8
    $region5: #{tpu_custom_call.1} parent=1 // pred_fallthru
      _
    // Predicated region
    $region6: #{tpu_custom_call.1} parent=1 // pred_check
      _
    $region7: #{tpu_custom_call.1} parent=1 // pred_check_branch
      %26 = sbr.rel (0) target = $region9
    $region8: #{tpu_custom_call.1} parent=1 // pred_region
      %s28 = ssub.s32 512, 512
      %29 = vsyncadd [#allocation6], %s28
      %s30 = sshll.u32 [#allocation5], 4
      %s31 = int_to_ptr.vmem [resolvable:$true] %s30
      %36 = dma.hbm_to_vmem [thread:$0]  %s1, 512, %s31, [#allocation6], 128, 128, 8
    $region9: #{tpu_custom_call.1} parent=1 // pred_fallthru
      _
    // Predicated region
    $region10: #{tpu_custom_call.1} parent=1 // pred_check
      _
    $region11: #{tpu_custom_call.1} parent=1 // pred_check_branch
      %38 = sbr.rel (0) target = $region13
    $region12: #{tpu_custom_call.1} parent=1 // pred_region
      %s40 = ssub.s32 128, 128
      %41 = vsyncadd [#allocation6], %s40
      %s43 = sshll.u32 [#allocation7], 4
      %s44 = int_to_ptr.vmem [resolvable:$true] %s43
      %46 = dma.hbm_to_vmem [thread:$0]  %s2, 128, %s44, [#allocation6]
    $region13: #{tpu_custom_call.1} parent=1 // pred_fallthru
      _
    // Predicated region
    $region14: #{tpu_custom_call.1} parent=1 // pred_check
      _
    $region15: #{tpu_custom_call.1} parent=1 // pred_check_branch
      %48 = sbr.rel (0) target = $region17
    $region16: #{tpu_custom_call.1} parent=1 // pred_region
      %s50 = ssub.s32 6272, 6272
      %51 = vsyncadd [#allocation9], %s50
      %s52 = sshll.u32 [#allocation8], 4
      %s53 = int_to_ptr.vmem [resolvable:$true] %s52
      %58 = dma.hbm_to_vmem [thread:$0]  %s3, 6272, %s53, [#allocation9], 128, 128, 8
    $region17: #{tpu_custom_call.1} parent=1 // pred_fallthru
      _
    // Predicated region
    $region18: #{tpu_custom_call.1} parent=1 // pred_check
      _
    $region19: #{tpu_custom_call.1} parent=1 // pred_check_branch
      %60 = sbr.rel (0) target = $region21
    $region20: #{tpu_custom_call.1} parent=1 // pred_region
      %61 = dma.done [#allocation3], 512
    $region21: #{tpu_custom_call.1} parent=1 // pred_fallthru
      _
    // Predicated region
    $region22: #{tpu_custom_call.1} parent=1 // pred_check
      _
    $region23: #{tpu_custom_call.1} parent=1 // pred_check_branch
      %63 = sbr.rel (0) target = $region25
    $region24: #{tpu_custom_call.1} parent=1 // pred_region
      %64 = dma.done [#allocation6], 512
    $region25: #{tpu_custom_call.1} parent=1 // pred_fallthru
      _
    // Predicated region
    $region26: #{tpu_custom_call.1} parent=1 // pred_check
      _
    $region27: #{tpu_custom_call.1} parent=1 // pred_check_branch
      %66 = sbr.rel (0) target = $region29
    $region28: #{tpu_custom_call.1} parent=1 // pred_region
      %67 = dma.done [#allocation6], 128
    $region29: #{tpu_custom_call.1} parent=1 // pred_fallthru
      _
    // Predicated region
    $region30: #{tpu_custom_call.1} parent=1 // pred_check
      _
    $region31: #{tpu_custom_call.1} parent=1 // pred_check_branch
      %69 = sbr.rel (0) target = $region33
    $region32: #{tpu_custom_call.1} parent=1 // pred_region
      %70 = dma.done [#allocation9], 6272
    $region33: #{tpu_custom_call.1} parent=1 // pred_fallthru
      _
    %v71 = vld [vmem:[#allocation2] sm:$0xff]
    %v72 = vld [vmem:[#allocation2 + $0x8] sm:$0xff]
    %v73 = vld [vmem:[#allocation2 + $0x10] sm:$0xff]
    %v74 = vld [vmem:[#allocation2 + $0x18] sm:$0xff]
    %v75 = vld [vmem:[#allocation5] sm:$0xff]
    %v76 = vld [vmem:[#allocation5 + $0x8] sm:$0xff]
    %v77 = vld [vmem:[#allocation5 + $0x10] sm:$0xff]
    %v78 = vld [vmem:[#allocation5 + $0x18] sm:$0xff]
    %v79 = vld [vmem:[#allocation7] sm:$0xff]
    %v80 = vld [vmem:[#allocation8] sm:$0xff]
    %v81 = vld [vmem:[#allocation8 + $0x8] sm:$0xff]
    %v82 = vld [vmem:[#allocation8 + $0x10] sm:$0xff]
    %v83 = vld [vmem:[#allocation8 + $0x18] sm:$0xff]
    %v84 = vld [vmem:[#allocation8 + $0x20] sm:$0xff]
    %v85 = vld [vmem:[#allocation8 + $0x28] sm:$0xff]
    %v86 = vld [vmem:[#allocation8 + $0x30] sm:$0xff]
    %v87 = vld [vmem:[#allocation8 + $0x38] sm:$0xff]
    %v88 = vld [vmem:[#allocation8 + $0x40] sm:$0xff]
    %v89 = vld [vmem:[#allocation8 + $0x48] sm:$0xff]
    %v90 = vld [vmem:[#allocation8 + $0x50] sm:$0xff]
    %v91 = vld [vmem:[#allocation8 + $0x58] sm:$0xff]
    %v92 = vld [vmem:[#allocation8 + $0x60] sm:$0xff]
    %v93 = vld [vmem:[#allocation8 + $0x68] sm:$0xff]
    %v94 = vld [vmem:[#allocation8 + $0x70] sm:$0xff]
    %v95 = vld [vmem:[#allocation8 + $0x78] sm:$0xff]
    %v96 = vld [vmem:[#allocation8 + $0x80] sm:$0xff]
    %v97 = vld [vmem:[#allocation8 + $0x88] sm:$0xff]
    %v98 = vld [vmem:[#allocation8 + $0x90] sm:$0xff]
    %v99 = vld [vmem:[#allocation8 + $0x98] sm:$0xff]
    %v100 = vld [vmem:[#allocation8 + $0xa0] sm:$0xff]
    %v101 = vld [vmem:[#allocation8 + $0xa8] sm:$0xff]
    %v102 = vld [vmem:[#allocation8 + $0xb0] sm:$0xff]
    %v103 = vld [vmem:[#allocation8 + $0xb8] sm:$0xff]
    %v104 = vld [vmem:[#allocation8 + $0xc0] sm:$0xff]
    %v105 = vld [vmem:[#allocation8 + $0xc8] sm:$0xff]
    %v106 = vld [vmem:[#allocation8 + $0xd0] sm:$0xff]
    %v107 = vld [vmem:[#allocation8 + $0xd8] sm:$0xff]
    %v108 = vld [vmem:[#allocation8 + $0xe0] sm:$0xff]
    %v109 = vld [vmem:[#allocation8 + $0xe8] sm:$0xff]
    %v110 = vld [vmem:[#allocation8 + $0xf0] sm:$0xff]
    %v111 = vld [vmem:[#allocation8 + $0xf8] sm:$0xff]
    %v112 = vld [vmem:[#allocation8 + $0x100] sm:$0xff]
    %v113 = vld [vmem:[#allocation8 + $0x108] sm:$0xff]
    %v114 = vld [vmem:[#allocation8 + $0x110] sm:$0xff]
    %v115 = vld [vmem:[#allocation8 + $0x118] sm:$0xff]
    %v116 = vld [vmem:[#allocation8 + $0x120] sm:$0xff]
    %v117 = vld [vmem:[#allocation8 + $0x128] sm:$0xff]
    %v118 = vld [vmem:[#allocation8 + $0x130] sm:$0xff]
    %v119 = vld [vmem:[#allocation8 + $0x138] sm:$0xff]
    %v120 = vld [vmem:[#allocation8 + $0x140] sm:$0xff]
    %v121 = vld [vmem:[#allocation8 + $0x148] sm:$0xff]
    %v122 = vld [vmem:[#allocation8 + $0x150] sm:$0xff]
    %v123 = vld [vmem:[#allocation8 + $0x158] sm:$0xff]
    %v124 = vld [vmem:[#allocation8 + $0x160] sm:$0xff]
    %v125 = vld [vmem:[#allocation8 + $0x168] sm:$0xff]
    %v126 = vld [vmem:[#allocation8 + $0x170] sm:$0xff]
    %v127 = vld [vmem:[#allocation8 + $0x178] sm:$0xff]
    %v128 = vld [vmem:[#allocation8 + $0x180] sm:$0x1]
    %v129 = vld [vmem:[#allocation8 + $0x181] sm:$0x1]
    %v130 = vld [vmem:[#allocation8 + $0x182] sm:$0x1]
    %131 = vmatprep.subr.mxu0 0.0
    %132 = vmatpush1.msra.mxu0 %v95
    %133 = vmatprep.subr.mxu0 0.0
    %134 = vmatpush1.msra.mxu0 %v94
    %135 = vmatprep.subr.mxu0 0.0
    %136 = vmatpush1.msra.mxu0 %v93
    %137 = vmatprep.subr.mxu0 0.0
    %138 = vmatpush1.msra.mxu0 %v92
    %139 = vmatprep.subr.mxu0 0.0
    %140 = vmatpush1.msra.mxu0 %v91
    %141 = vmatprep.subr.mxu0 0.0
    %142 = vmatpush1.msra.mxu0 %v90
    %143 = vmatprep.subr.mxu0 0.0
    %144 = vmatpush1.msra.mxu0 %v89
    %145 = vmatprep.subr.mxu0 0.0
    %146 = vmatpush1.msra.mxu0 %v88
    %147 = vmatprep.subr.mxu0 0.0
    %148 = vmatpush1.msra.mxu0 %v87
    %149 = vmatprep.subr.mxu0 0.0
    %150 = vmatpush1.msra.mxu0 %v86
    %151 = vmatprep.subr.mxu0 0.0
    %152 = vmatpush1.msra.mxu0 %v85
    %153 = vmatprep.subr.mxu0 0.0
    %154 = vmatpush1.msra.mxu0 %v84
    %155 = vmatprep.subr.mxu0 0.0
    %156 = vmatpush1.msra.mxu0 %v83
    %157 = vmatprep.subr.mxu0 0.0
    %158 = vmatpush1.msra.mxu0 %v82
    %159 = vmatprep.subr.mxu0 0.0
    %160 = vmatpush1.msra.mxu0 %v81
    %161 = vmatprep.subr.mxu0 0.0
    %162 = vmatpush1.msra.mxu0 %v80
    %163 = vmatprep.subr.mxu0 0.0
    %164 = vmatpush2.msra.mxu0 0.0
    %165 = vmatprep.subr.mxu0 0.0
    %166 = vmatpush2.msra.mxu0 0.0
    %167 = vmatprep.subr.mxu0 0.0
    %168 = vmatpush2.msra.mxu0 0.0
    %169 = vmatprep.subr.mxu0 0.0
    %170 = vmatpush2.msra.mxu0 0.0
    %171 = vmatprep.subr.mxu0 0.0
    %172 = vmatpush2.msra.mxu0 0.0
    %173 = vmatprep.subr.mxu0 0.0
    %174 = vmatpush2.msra.mxu0 0.0
    %175 = vmatprep.subr.mxu0 0.0
    %176 = vmatpush2.msra.mxu0 0.0
    %177 = vmatprep.subr.mxu0 0.0
    %178 = vmatpush2.msra.mxu0 0.0
    %179 = vmatprep.subr.mxu0 0.0
    %180 = vmatpush2.msra.mxu0 0.0
    %181 = vmatprep.subr.mxu0 0.0
    %182 = vmatpush2.msra.mxu0 0.0
    %183 = vmatprep.subr.mxu0 0.0
    %184 = vmatpush2.msra.mxu0 0.0
    %185 = vmatprep.subr.mxu0 0.0
    %186 = vmatpush2.msra.mxu0 0.0
    %187 = vmatprep.subr.mxu0 0.0
    %188 = vmatpush2.msra.mxu0 0.0
    %189 = vmatprep.subr.mxu0 0.0
    %190 = vmatpush2.msra.mxu0 0.0
    %191 = vmatprep.subr.mxu0 0.0
    %192 = vmatpush2.msra.mxu0 0.0
    %193 = vmatprep.subr.mxu0 0.0
    %194 = vmatpush2.msra.mxu0 0.0
    %195 = vmatprep.mubr.f32.mxu0 0.0
    %196 = vmatmul.mubr.f32.gmra.mxu0 %v75
    %v197 = vpop.f32.mrf.mxu0
    %v198 = vadd.f32 0.0, %v197
    %v199 = vpop.f32.mrf.mxu0
    %200 = vmatprep.mubr.f32.mxu0 0.0
    %201 = vmatmul.mubr.f32.gmra.mxu0 %v76
    %v202 = vpop.f32.mrf.mxu0
    %v203 = vadd.f32 0.0, %v202
    %v204 = vpop.f32.mrf.mxu0
    %205 = vmatprep.mubr.f32.mxu0 0.0
    %206 = vmatmul.mubr.f32.gmra.mxu0 %v77
    %v207 = vpop.f32.mrf.mxu0
    %v208 = vadd.f32 0.0, %v207
    %v209 = vpop.f32.mrf.mxu0
    %210 = vmatprep.mubr.f32.mxu0 0.0
    %211 = vmatmul.mubr.f32.gmra.mxu0 %v78
    %v212 = vpop.f32.mrf.mxu0
    %v213 = vadd.f32 0.0, %v212
    %v214 = vpop.f32.mrf.mxu0
    %215 = vdwg.mxu0
    %v216 = vlaneseq
    %v217 = vshrl.u32 %v216, 7
    %v218 = vsub.s32 0, %v217
    %v219 = vrot.slane %v128, %v218
    %vm220 = vcmask 261120
    %v222 = vsel %vm220, %v71, 0
    %v225 = vsel %vm220, %v72, 0
    %v228 = vsel %vm220, %v73, 0
    %v231 = vsel %vm220, %v74, 0
    %233 = vmatprep.subr.mxu0 0.0
    %234 = vmatpush1.msra.mxu0 0.0
    %235 = vmatprep.subr.mxu0 0.0
    %236 = vmatpush1.msra.mxu0 0.0
    %237 = vmatprep.subr.mxu0 0.0
    %238 = vmatpush1.msra.mxu0 0.0
    %239 = vmatprep.subr.mxu0 0.0
    %240 = vmatpush1.msra.mxu0 0.0
    %241 = vmatprep.subr.mxu0 0.0
    %242 = vmatpush1.msra.mxu0 0.0
    %243 = vmatprep.subr.mxu0 0.0
    %244 = vmatpush1.msra.mxu0 0.0
    %245 = vmatprep.subr.mxu0 0.0
    %246 = vmatpush1.msra.mxu0 0.0
    %247 = vmatprep.subr.mxu0 0.0
    %248 = vmatpush1.msra.mxu0 0.0
    %249 = vmatprep.subr.mxu0 0.0
    %250 = vmatpush1.msra.mxu0 0.0
    %251 = vmatprep.subr.mxu0 0.0
    %252 = vmatpush1.msra.mxu0 0.0
    %253 = vmatprep.subr.mxu0 0.0
    %254 = vmatpush1.msra.mxu0 0.0
    %255 = vmatprep.subr.mxu0 0.0
    %256 = vmatpush1.msra.mxu0 0.0
    %257 = vmatprep.subr.mxu0 0.0
    %258 = vmatpush1.msra.mxu0 %v213
    %259 = vmatprep.subr.mxu0 0.0
    %260 = vmatpush1.msra.mxu0 %v208
    %261 = vmatprep.subr.mxu0 0.0
    %262 = vmatpush1.msra.mxu0 %v203
    %263 = vmatprep.subr.mxu0 0.0
    %264 = vmatpush1.msra.mxu0 %v198
    %265 = vmatprep.subr.mxu0 0.0
    %266 = vmatpush2.msra.mxu0 0.0
    %267 = vmatprep.subr.mxu0 0.0
    %268 = vmatpush2.msra.mxu0 0.0
    %269 = vmatprep.subr.mxu0 0.0
    %270 = vmatpush2.msra.mxu0 0.0
    %271 = vmatprep.subr.mxu0 0.0
    %272 = vmatpush2.msra.mxu0 0.0
    %273 = vmatprep.subr.mxu0 0.0
    %274 = vmatpush2.msra.mxu0 0.0
    %275 = vmatprep.subr.mxu0 0.0
    %276 = vmatpush2.msra.mxu0 0.0
    %277 = vmatprep.subr.mxu0 0.0
    %278 = vmatpush2.msra.mxu0 0.0
    %279 = vmatprep.subr.mxu0 0.0
    %280 = vmatpush2.msra.mxu0 0.0
    %281 = vmatprep.subr.mxu0 0.0
    %282 = vmatpush2.msra.mxu0 0.0
    %283 = vmatprep.subr.mxu0 0.0
    %284 = vmatpush2.msra.mxu0 0.0
    %285 = vmatprep.subr.mxu0 0.0
    %286 = vmatpush2.msra.mxu0 0.0
    %287 = vmatprep.subr.mxu0 0.0
    %288 = vmatpush2.msra.mxu0 0.0
    %289 = vmatprep.subr.mxu0 0.0
    %290 = vmatpush2.msra.mxu0 0.0
    %291 = vmatprep.subr.mxu0 0.0
    %292 = vmatpush2.msra.mxu0 0.0
    %293 = vmatprep.subr.mxu0 0.0
    %294 = vmatpush2.msra.mxu0 0.0
    %295 = vmatprep.subr.mxu0 0.0
    %296 = vmatpush2.msra.mxu0 0.0
    %297 = vmatprep.mubr.f32.mxu0 0.0
    %298 = vmatmul.mubr.f32.gmra.mxu0 %v222
    %v299 = vpop.f32.mrf.mxu0
    %v300 = vadd.f32 %v219, %v299
    %v301 = vpop.f32.mrf.mxu0
    %302 = vmatprep.mubr.f32.mxu0 0.0
    %303 = vmatmul.mubr.f32.gmra.mxu0 %v225
    %v304 = vpop.f32.mrf.mxu0
    %v305 = vadd.f32 %v219, %v304
    %v306 = vpop.f32.mrf.mxu0
    %307 = vmatprep.mubr.f32.mxu0 0.0
    %308 = vmatmul.mubr.f32.gmra.mxu0 %v228
    %v309 = vpop.f32.mrf.mxu0
    %v310 = vadd.f32 %v219, %v309
    %v311 = vpop.f32.mrf.mxu0
    %312 = vmatprep.mubr.f32.mxu0 0.0
    %313 = vmatmul.mubr.f32.gmra.mxu0 %v231
    %v314 = vpop.f32.mrf.mxu0
    %v315 = vadd.f32 %v219, %v314
    %v316 = vpop.f32.mrf.mxu0
    %317 = vdwg.mxu0
    %v318 = vmax.f32 %v300, 0.0
    %v319 = vmax.f32 %v305, 0.0
    %v320 = vmax.f32 %v310, 0.0
    %v321 = vmax.f32 %v315, 0.0
    %322 = vmatprep.subr.mxu0 0.0
    %323 = vmatpush1.msra.mxu0 %v111
    %324 = vmatprep.subr.mxu0 0.0
    %325 = vmatpush1.msra.mxu0 %v110
    %326 = vmatprep.subr.mxu0 0.0
    %327 = vmatpush1.msra.mxu0 %v109
    %328 = vmatprep.subr.mxu0 0.0
    %329 = vmatpush1.msra.mxu0 %v108
    %330 = vmatprep.subr.mxu0 0.0
    %331 = vmatpush1.msra.mxu0 %v107
    %332 = vmatprep.subr.mxu0 0.0
    %333 = vmatpush1.msra.mxu0 %v106
    %334 = vmatprep.subr.mxu0 0.0
    %335 = vmatpush1.msra.mxu0 %v105
    %336 = vmatprep.subr.mxu0 0.0
    %337 = vmatpush1.msra.mxu0 %v104
    %338 = vmatprep.subr.mxu0 0.0
    %339 = vmatpush1.msra.mxu0 %v103
    %340 = vmatprep.subr.mxu0 0.0
    %341 = vmatpush1.msra.mxu0 %v102
    %342 = vmatprep.subr.mxu0 0.0
    %343 = vmatpush1.msra.mxu0 %v101
    %344 = vmatprep.subr.mxu0 0.0
    %345 = vmatpush1.msra.mxu0 %v100
    %346 = vmatprep.subr.mxu0 0.0
    %347 = vmatpush1.msra.mxu0 %v99
    %348 = vmatprep.subr.mxu0 0.0
    %349 = vmatpush1.msra.mxu0 %v98
    %350 = vmatprep.subr.mxu0 0.0
    %351 = vmatpush1.msra.mxu0 %v97
    %352 = vmatprep.subr.mxu0 0.0
    %353 = vmatpush1.msra.mxu0 %v96
    %354 = vmatprep.subr.mxu0 0.0
    %355 = vmatpush2.msra.mxu0 0.0
    %356 = vmatprep.subr.mxu0 0.0
    %357 = vmatpush2.msra.mxu0 0.0
    %358 = vmatprep.subr.mxu0 0.0
    %359 = vmatpush2.msra.mxu0 0.0
    %360 = vmatprep.subr.mxu0 0.0
    %361 = vmatpush2.msra.mxu0 0.0
    %362 = vmatprep.subr.mxu0 0.0
    %363 = vmatpush2.msra.mxu0 0.0
    %364 = vmatprep.subr.mxu0 0.0
    %365 = vmatpush2.msra.mxu0 0.0
    %366 = vmatprep.subr.mxu0 0.0
    %367 = vmatpush2.msra.mxu0 0.0
    %368 = vmatprep.subr.mxu0 0.0
    %369 = vmatpush2.msra.mxu0 0.0
    %370 = vmatprep.subr.mxu0 0.0
    %371 = vmatpush2.msra.mxu0 0.0
    %372 = vmatprep.subr.mxu0 0.0
    %373 = vmatpush2.msra.mxu0 0.0
    %374 = vmatprep.subr.mxu0 0.0
    %375 = vmatpush2.msra.mxu0 0.0
    %376 = vmatprep.subr.mxu0 0.0
    %377 = vmatpush2.msra.mxu0 0.0
    %378 = vmatprep.subr.mxu0 0.0
    %379 = vmatpush2.msra.mxu0 0.0
    %380 = vmatprep.subr.mxu0 0.0
    %381 = vmatpush2.msra.mxu0 0.0
    %382 = vmatprep.subr.mxu0 0.0
    %383 = vmatpush2.msra.mxu0 0.0
    %384 = vmatprep.subr.mxu0 0.0
    %385 = vmatpush2.msra.mxu0 0.0
    %386 = vmatprep.mubr.f32.mxu0 0.0
    %387 = vmatmul.mubr.f32.gmra.mxu0 %v318
    %v388 = vpop.f32.mrf.mxu0
    %v389 = vadd.f32 0.0, %v388
    %v390 = vpop.f32.mrf.mxu0
    %391 = vmatprep.mubr.f32.mxu0 0.0
    %392 = vmatmul.mubr.f32.gmra.mxu0 %v319
    %v393 = vpop.f32.mrf.mxu0
    %v394 = vadd.f32 0.0, %v393
    %v395 = vpop.f32.mrf.mxu0
    %396 = vmatprep.mubr.f32.mxu0 0.0
    %397 = vmatmul.mubr.f32.gmra.mxu0 %v320
    %v398 = vpop.f32.mrf.mxu0
    %v399 = vadd.f32 0.0, %v398
    %v400 = vpop.f32.mrf.mxu0
    %401 = vmatprep.mubr.f32.mxu0 0.0
    %402 = vmatmul.mubr.f32.gmra.mxu0 %v321
    %v403 = vpop.f32.mrf.mxu0
    %v404 = vadd.f32 0.0, %v403
    %v405 = vpop.f32.mrf.mxu0
    %406 = vdwg.mxu0
    %v407 = vlaneseq
    %v408 = vshrl.u32 %v407, 7
    %v409 = vsub.s32 0, %v408
    %v410 = vrot.slane %v129, %v409
    %411 = vmatprep.subr.mxu0 0.0
    %412 = vmatpush1.msra.mxu0 0.0
    %413 = vmatprep.subr.mxu0 0.0
    %414 = vmatpush1.msra.mxu0 0.0
    %415 = vmatprep.subr.mxu0 0.0
    %416 = vmatpush1.msra.mxu0 0.0
    %417 = vmatprep.subr.mxu0 0.0
    %418 = vmatpush1.msra.mxu0 0.0
    %419 = vmatprep.subr.mxu0 0.0
    %420 = vmatpush1.msra.mxu0 0.0
    %421 = vmatprep.subr.mxu0 0.0
    %422 = vmatpush1.msra.mxu0 0.0
    %423 = vmatprep.subr.mxu0 0.0
    %424 = vmatpush1.msra.mxu0 0.0
    %425 = vmatprep.subr.mxu0 0.0
    %426 = vmatpush1.msra.mxu0 0.0
    %427 = vmatprep.subr.mxu0 0.0
    %428 = vmatpush1.msra.mxu0 0.0
    %429 = vmatprep.subr.mxu0 0.0
    %430 = vmatpush1.msra.mxu0 0.0
    %431 = vmatprep.subr.mxu0 0.0
    %432 = vmatpush1.msra.mxu0 0.0
    %433 = vmatprep.subr.mxu0 0.0
    %434 = vmatpush1.msra.mxu0 0.0
    %435 = vmatprep.subr.mxu0 0.0
    %436 = vmatpush1.msra.mxu0 %v404
    %437 = vmatprep.subr.mxu0 0.0
    %438 = vmatpush1.msra.mxu0 %v399
    %439 = vmatprep.subr.mxu0 0.0
    %440 = vmatpush1.msra.mxu0 %v394
    %441 = vmatprep.subr.mxu0 0.0
    %442 = vmatpush1.msra.mxu0 %v389
    %443 = vmatprep.subr.mxu0 0.0
    %444 = vmatpush2.msra.mxu0 0.0
    %445 = vmatprep.subr.mxu0 0.0
    %446 = vmatpush2.msra.mxu0 0.0
    %447 = vmatprep.subr.mxu0 0.0
    %448 = vmatpush2.msra.mxu0 0.0
    %449 = vmatprep.subr.mxu0 0.0
    %450 = vmatpush2.msra.mxu0 0.0
    %451 = vmatprep.subr.mxu0 0.0
    %452 = vmatpush2.msra.mxu0 0.0
    %453 = vmatprep.subr.mxu0 0.0
    %454 = vmatpush2.msra.mxu0 0.0
    %455 = vmatprep.subr.mxu0 0.0
    %456 = vmatpush2.msra.mxu0 0.0
    %457 = vmatprep.subr.mxu0 0.0
    %458 = vmatpush2.msra.mxu0 0.0
    %459 = vmatprep.subr.mxu0 0.0
    %460 = vmatpush2.msra.mxu0 0.0
    %461 = vmatprep.subr.mxu0 0.0
    %462 = vmatpush2.msra.mxu0 0.0
    %463 = vmatprep.subr.mxu0 0.0
    %464 = vmatpush2.msra.mxu0 0.0
    %465 = vmatprep.subr.mxu0 0.0
    %466 = vmatpush2.msra.mxu0 0.0
    %467 = vmatprep.subr.mxu0 0.0
    %468 = vmatpush2.msra.mxu0 0.0
    %469 = vmatprep.subr.mxu0 0.0
    %470 = vmatpush2.msra.mxu0 0.0
    %471 = vmatprep.subr.mxu0 0.0
    %472 = vmatpush2.msra.mxu0 0.0
    %473 = vmatprep.subr.mxu0 0.0
    %474 = vmatpush2.msra.mxu0 0.0
    %475 = vmatprep.mubr.f32.mxu0 0.0
    %476 = vmatmul.mubr.f32.gmra.mxu0 %v222
    %v477 = vpop.f32.mrf.mxu0
    %v478 = vadd.f32 %v410, %v477
    %v479 = vpop.f32.mrf.mxu0
    %480 = vmatprep.mubr.f32.mxu0 0.0
    %481 = vmatmul.mubr.f32.gmra.mxu0 %v225
    %v482 = vpop.f32.mrf.mxu0
    %v483 = vadd.f32 %v410, %v482
    %v484 = vpop.f32.mrf.mxu0
    %485 = vmatprep.mubr.f32.mxu0 0.0
    %486 = vmatmul.mubr.f32.gmra.mxu0 %v228
    %v487 = vpop.f32.mrf.mxu0
    %v488 = vadd.f32 %v410, %v487
    %v489 = vpop.f32.mrf.mxu0
    %490 = vmatprep.mubr.f32.mxu0 0.0
    %491 = vmatmul.mubr.f32.gmra.mxu0 %v231
    %v492 = vpop.f32.mrf.mxu0
    %v493 = vadd.f32 %v410, %v492
    %v494 = vpop.f32.mrf.mxu0
    %495 = vdwg.mxu0
    %v496 = vmax.f32 %v478, 0.0
    %v497 = vmax.f32 %v483, 0.0
    %v498 = vmax.f32 %v488, 0.0
    %v499 = vmax.f32 %v493, 0.0
    %v501 = vsel %vm220, %v79, 0
    %503 = vmatprep.subr.mxu0 0.0
    %504 = vmatpush1.msra.mxu0 0.0
    %505 = vmatprep.subr.mxu0 0.0
    %506 = vmatpush1.msra.mxu0 0.0
    %507 = vmatprep.subr.mxu0 0.0
    %508 = vmatpush1.msra.mxu0 0.0
    %509 = vmatprep.subr.mxu0 0.0
    %510 = vmatpush1.msra.mxu0 0.0
    %511 = vmatprep.subr.mxu0 0.0
    %512 = vmatpush1.msra.mxu0 0.0
    %513 = vmatprep.subr.mxu0 0.0
    %514 = vmatpush1.msra.mxu0 0.0
    %515 = vmatprep.subr.mxu0 0.0
    %516 = vmatpush1.msra.mxu0 0.0
    %517 = vmatprep.subr.mxu0 0.0
    %518 = vmatpush1.msra.mxu0 0.0
    %519 = vmatprep.subr.mxu0 0.0
    %520 = vmatpush1.msra.mxu0 0.0
    %521 = vmatprep.subr.mxu0 0.0
    %522 = vmatpush1.msra.mxu0 0.0
    %523 = vmatprep.subr.mxu0 0.0
    %524 = vmatpush1.msra.mxu0 0.0
    %525 = vmatprep.subr.mxu0 0.0
    %526 = vmatpush1.msra.mxu0 0.0
    %527 = vmatprep.subr.mxu0 0.0
    %528 = vmatpush1.msra.mxu0 %v499
    %529 = vmatprep.subr.mxu0 0.0
    %530 = vmatpush1.msra.mxu0 %v498
    %531 = vmatprep.subr.mxu0 0.0
    %532 = vmatpush1.msra.mxu0 %v497
    %533 = vmatprep.subr.mxu0 0.0
    %534 = vmatpush1.msra.mxu0 %v496
    %535 = vmatprep.subr.mxu0 0.0
    %536 = vmatpush2.msra.mxu0 0.0
    %537 = vmatprep.subr.mxu0 0.0
    %538 = vmatpush2.msra.mxu0 0.0
    %539 = vmatprep.subr.mxu0 0.0
    %540 = vmatpush2.msra.mxu0 0.0
    %541 = vmatprep.subr.mxu0 0.0
    %542 = vmatpush2.msra.mxu0 0.0
    %543 = vmatprep.subr.mxu0 0.0
    %544 = vmatpush2.msra.mxu0 0.0
    %545 = vmatprep.subr.mxu0 0.0
    %546 = vmatpush2.msra.mxu0 0.0
    %547 = vmatprep.subr.mxu0 0.0
    %548 = vmatpush2.msra.mxu0 0.0
    %549 = vmatprep.subr.mxu0 0.0
    %550 = vmatpush2.msra.mxu0 0.0
    %551 = vmatprep.subr.mxu0 0.0
    %552 = vmatpush2.msra.mxu0 0.0
    %553 = vmatprep.subr.mxu0 0.0
    %554 = vmatpush2.msra.mxu0 0.0
    %555 = vmatprep.subr.mxu0 0.0
    %556 = vmatpush2.msra.mxu0 0.0
    %557 = vmatprep.subr.mxu0 0.0
    %558 = vmatpush2.msra.mxu0 0.0
    %559 = vmatprep.subr.mxu0 0.0
    %560 = vmatpush2.msra.mxu0 0.0
    %561 = vmatprep.subr.mxu0 0.0
    %562 = vmatpush2.msra.mxu0 0.0
    %563 = vmatprep.subr.mxu0 0.0
    %564 = vmatpush2.msra.mxu0 0.0
    %565 = vmatprep.subr.mxu0 0.0
    %566 = vmatpush2.msra.mxu0 0.0
    %567 = vmatprep.mubr.f32.mxu0 0.0
    %568 = vmatmul.mubr.f32.gmra.mxu0 %v501
    %v569 = vpop.f32.mrf.mxu0
    %v570 = vadd.f32 0.0, %v569
    %v571 = vpop.f32.mrf.mxu0
    %572 = vdwg.mxu0
    %v573 = vlaneseq
    %v574 = vshrl.u32 %v573, 7
    %v575 = vsub.s32 0, %v574
    %v576 = vrot.slane %v130, %v575
    %577 = vmatprep.subr.mxu0 0.0
    %578 = vmatpush1.msra.mxu0 %v127
    %579 = vmatprep.subr.mxu0 0.0
    %580 = vmatpush1.msra.mxu0 %v126
    %581 = vmatprep.subr.mxu0 0.0
    %582 = vmatpush1.msra.mxu0 %v125
    %583 = vmatprep.subr.mxu0 0.0
    %584 = vmatpush1.msra.mxu0 %v124
    %585 = vmatprep.subr.mxu0 0.0
    %586 = vmatpush1.msra.mxu0 %v123
    %587 = vmatprep.subr.mxu0 0.0
    %588 = vmatpush1.msra.mxu0 %v122
    %589 = vmatprep.subr.mxu0 0.0
    %590 = vmatpush1.msra.mxu0 %v121
    %591 = vmatprep.subr.mxu0 0.0
    %592 = vmatpush1.msra.mxu0 %v120
    %593 = vmatprep.subr.mxu0 0.0
    %594 = vmatpush1.msra.mxu0 %v119
    %595 = vmatprep.subr.mxu0 0.0
    %596 = vmatpush1.msra.mxu0 %v118
    %597 = vmatprep.subr.mxu0 0.0
    %598 = vmatpush1.msra.mxu0 %v117
    %599 = vmatprep.subr.mxu0 0.0
    %600 = vmatpush1.msra.mxu0 %v116
    %601 = vmatprep.subr.mxu0 0.0
    %602 = vmatpush1.msra.mxu0 %v115
    %603 = vmatprep.subr.mxu0 0.0
    %604 = vmatpush1.msra.mxu0 %v114
    %605 = vmatprep.subr.mxu0 0.0
    %606 = vmatpush1.msra.mxu0 %v113
    %607 = vmatprep.subr.mxu0 0.0
    %608 = vmatpush1.msra.mxu0 %v112
    %609 = vmatprep.subr.mxu0 0.0
    %610 = vmatpush2.msra.mxu0 0.0
    %611 = vmatprep.subr.mxu0 0.0
    %612 = vmatpush2.msra.mxu0 0.0
    %613 = vmatprep.subr.mxu0 0.0
    %614 = vmatpush2.msra.mxu0 0.0
    %615 = vmatprep.subr.mxu0 0.0
    %616 = vmatpush2.msra.mxu0 0.0
    %617 = vmatprep.subr.mxu0 0.0
    %618 = vmatpush2.msra.mxu0 0.0
    %619 = vmatprep.subr.mxu0 0.0
    %620 = vmatpush2.msra.mxu0 0.0
    %621 = vmatprep.subr.mxu0 0.0
    %622 = vmatpush2.msra.mxu0 0.0
    %623 = vmatprep.subr.mxu0 0.0
    %624 = vmatpush2.msra.mxu0 0.0
    %625 = vmatprep.subr.mxu0 0.0
    %626 = vmatpush2.msra.mxu0 0.0
    %627 = vmatprep.subr.mxu0 0.0
    %628 = vmatpush2.msra.mxu0 0.0
    %629 = vmatprep.subr.mxu0 0.0
    %630 = vmatpush2.msra.mxu0 0.0
    %631 = vmatprep.subr.mxu0 0.0
    %632 = vmatpush2.msra.mxu0 0.0
    %633 = vmatprep.subr.mxu0 0.0
    %634 = vmatpush2.msra.mxu0 0.0
    %635 = vmatprep.subr.mxu0 0.0
    %636 = vmatpush2.msra.mxu0 0.0
    %637 = vmatprep.subr.mxu0 0.0
    %638 = vmatpush2.msra.mxu0 0.0
    %639 = vmatprep.subr.mxu0 0.0
    %640 = vmatpush2.msra.mxu0 0.0
    %641 = vmatprep.mubr.f32.mxu0 0.0
    %642 = vmatmul.mubr.f32.gmra.mxu0 %v570
    %v643 = vpop.f32.mrf.mxu0
    %v644 = vadd.f32 %v576, %v643
    %v645 = vpop.f32.mrf.mxu0
    %646 = vdwg.mxu0
    %647 = vst [vmem:[#allocation10] sm:$0xff] %v644
    // Predicated region
    $region34: #{tpu_custom_call.1} parent=1 // pred_check
      _
    $region35: #{tpu_custom_call.1} parent=1 // pred_check_branch
      %649 = sbr.rel (0) target = $region37
    $region36: #{tpu_custom_call.1} parent=1 // pred_region
      %s651 = ssub.s32 128, 128
      %652 = vsyncadd [#allocation4], %s651
      %s654 = sshll.u32 [#allocation10], 4
      %s655 = int_to_ptr.vmem [resolvable:$true] %s654
      %657 = dma.vmem_to_hbm [thread:$0]  %s655, 128, %s4, [#allocation4]
    $region37: #{tpu_custom_call.1} parent=1 // pred_fallthru
      _
    // Predicated region
    $region38: #{tpu_custom_call.1} parent=1 // pred_check
      _
    $region39: #{tpu_custom_call.1} parent=1 // pred_check_branch
      %659 = sbr.rel (0) target = $region41
    $region40: #{tpu_custom_call.1} parent=1 // pred_region
      %660 = dma.done [#allocation4], 128
    $region41: #{tpu_custom_call.1} parent=1 // pred_fallthru
      _
    %661 = vsyncpa [#allocation3], 1
    %662 = vsyncpa [#allocation6], 1
    %663 = vsyncpa [#allocation9], 1
    %664 = vsyncpa [#allocation4], 1

</llo_original>
